<compile_context>
chip_gen: v7x
topology: tpu7x:2x2x1
jax: 0.10.0
libtpu: 0.0.40
codegen_flags: <defaults>
</compile_context>

<pallas_src>
import jax
import jax.numpy as jnp
from jax import lax
from jax.experimental import pallas as pl
from jax.experimental.pallas import tpu as pltpu


def ffn_kernel(x_ref, w1_ref, b1_ref, w2_ref, b2_ref, o_ref):
    # Contract x's feature dim with dim 1 of the (out, in) weight: y = x @ W.T
    dn = (((1,), (1,)), ((), ()))
    # lr1 + bias (f32 accumulate)
    h = lax.dot_general(x_ref[...], w1_ref[...], dn,
                        preferred_element_type=jnp.float32) + b1_ref[...]
    # ReLU
    h = jnp.maximum(h, 0.0)
    # lr2 + bias (activations fed to the MXU in the weight dtype, f32 accumulate)
    y = lax.dot_general(h.astype(w2_ref.dtype), w2_ref[...], dn,
                        preferred_element_type=jnp.float32) + b2_ref[...]
    # dropout -> identity (eval mode)
    o_ref[...] = y.astype(o_ref.dtype)


def _round_up(n, m):
    return ((n + m - 1) // m) * m


def _choose_tile_m(b, max_tile=256):
    """Largest batch tile (multiple of 8, <= max_tile) that still gives
    >= 2 grid programs when the batch allows (2 TensorCores on v7x)."""
    if b <= max_tile:
        return max(8, _round_up((b + 1) // 2, 8))
    return max_tile


def ffn_forward(x, w1, b1, w2, b2, *, tile_m=None, use_bf16=True):
    """x: [B, D]; w1, w2: [D, D] in PyTorch (out, in) layout; b1, b2: [D]."""
    B, D = x.shape
    assert w1.shape == (D, D) and w2.shape == (D, D)
    assert b1.shape == (D,) and b2.shape == (D,)

    # Pad feature dim to a lane-dense multiple of 128 (e.g. 200 -> 256).
    Dp = _round_up(D, 128)
    if tile_m is None:
        tile_m = _choose_tile_m(B)
    assert tile_m % 8 == 0
    Bp = _round_up(B, tile_m)

    compute_dtype = jnp.bfloat16 if use_bf16 else x.dtype

    # Zero-pad once in the wrapper (padded rows/cols produce values we slice off).
    x_p = jnp.pad(x, ((0, Bp - B), (0, Dp - D))).astype(compute_dtype)
    w1_p = jnp.pad(w1, ((0, Dp - D), (0, Dp - D))).astype(compute_dtype)
    w2_p = jnp.pad(w2, ((0, Dp - D), (0, Dp - D))).astype(compute_dtype)
    b1_p = jnp.pad(b1, (0, Dp - D)).reshape(1, Dp).astype(jnp.float32)
    b2_p = jnp.pad(b2, (0, Dp - D)).reshape(1, Dp).astype(jnp.float32)

    itemsize = jnp.dtype(compute_dtype).itemsize
    cost = pl.CostEstimate(
        flops=4 * Bp * Dp * Dp,            # two (Bp x Dp) @ (Dp x Dp) matmuls
        transcendentals=0,
        bytes_accessed=int(Bp * Dp * itemsize        # x
                           + 2 * Dp * Dp * itemsize  # weights
                           + 2 * Dp * 4              # biases
                           + Bp * Dp * 4),           # output
    )

    grid = (Bp // tile_m,)
    out_p = pl.pallas_call(
        ffn_kernel,
        out_shape=jax.ShapeDtypeStruct((Bp, Dp), x.dtype),
        grid_spec=pltpu.PrefetchScalarGridSpec(
            num_scalar_prefetch=0,
            grid=grid,
            in_specs=[
                pl.BlockSpec((tile_m, Dp), lambda i: (i, 0)),   # x tile
                pl.BlockSpec((Dp, Dp), lambda i: (0, 0)),       # W1 (out,in)
                pl.BlockSpec((1, Dp), lambda i: (0, 0)),        # b1
                pl.BlockSpec((Dp, Dp), lambda i: (0, 0)),       # W2 (out,in)
                pl.BlockSpec((1, Dp), lambda i: (0, 0)),        # b2
            ],
            out_specs=pl.BlockSpec((tile_m, Dp), lambda i: (i, 0)),
        ),
        compiler_params=pltpu.CompilerParams(
            dimension_semantics=("parallel",)),
        cost_estimate=cost,
    )(x_p, w1_p, b1_p, w2_p, b2_p)

    return out_p[:B, :D]


if __name__ == "__main__":
    state_size = 200   # module default (non-multiple of 128 -> exercises padding)
    batch = 64

    key = jax.random.PRNGKey(0)
    kx, k1, k2, k3, k4 = jax.random.split(key, 5)

    # Deterministic init mimicking nn.Linear: U(-1/sqrt(in), 1/sqrt(in))
    bound = 1.0 / (state_size ** 0.5)
    x = jax.random.normal(kx, (batch, state_size), dtype=jnp.float32)
    w1 = jax.random.uniform(k1, (state_size, state_size), jnp.float32, -bound, bound)
    b1 = jax.random.uniform(k2, (state_size,), jnp.float32, -bound, bound)
    w2 = jax.random.uniform(k3, (state_size, state_size), jnp.float32, -bound, bound)
    b2 = jax.random.uniform(k4, (state_size,), jnp.float32, -bound, bound)

    # Pure-JAX reference (eval-mode dropout == identity)
    ref = jnp.maximum(x @ w1.T + b1, 0.0) @ w2.T + b2

    # f32 path: tight tolerance
    out_f32 = jax.block_until_ready(ffn_forward(x, w1, b1, w2, b2, use_bf16=False))
    assert jnp.allclose(out_f32, ref, atol=1e-4, rtol=1e-4), "f32 mismatch vs reference"

    # bf16 MXU path (default): looser tolerance from bf16 operand rounding
    out_bf16 = jax.block_until_ready(ffn_forward(x, w1, b1, w2, b2, use_bf16=True))
    assert jnp.allclose(out_bf16, ref, atol=3e-2, rtol=3e-2), "bf16 mismatch vs reference"

    print("KERNEL_OK")
</pallas_src>

<mosaic_0001>
module attributes {stable_mosaic.version = 11 : i64} {
  func.func @ffn_kernel(%arg0: i32, %arg1: memref<32x256xf32, #tpu.memory_space<vmem>>, %arg2: memref<256x256xf32, #tpu.memory_space<vmem>>, %arg3: memref<1x256xf32, #tpu.memory_space<vmem>>, %arg4: memref<256x256xf32, #tpu.memory_space<vmem>>, %arg5: memref<1x256xf32, #tpu.memory_space<vmem>>, %arg6: memref<32x256xf32, #tpu.memory_space<vmem>>) attributes {dimension_semantics = [#tpu.dimension_semantics<parallel>], iteration_bounds = array<i64: 2>, scalar_prefetch = 0 : i64, scratch_operands = 0 : i64, tpu.core_type = #tpu.core_type<tc>, window_params = [{transform_indices = @transform_0, window_bounds = array<i64: 32, 256>}, {pipeline_mode = #tpu.pipeline_mode<synchronous>, transform_indices = @transform_1, window_bounds = array<i64: 256, 256>}, {pipeline_mode = #tpu.pipeline_mode<synchronous>, transform_indices = @transform_2, window_bounds = array<i64: 1, 256>}, {pipeline_mode = #tpu.pipeline_mode<synchronous>, transform_indices = @transform_3, window_bounds = array<i64: 256, 256>}, {pipeline_mode = #tpu.pipeline_mode<synchronous>, transform_indices = @transform_4, window_bounds = array<i64: 1, 256>}, {transform_indices = @transform_5, window_bounds = array<i64: 32, 256>}]} {
    %c0 = arith.constant 0 : index
    %c0_0 = arith.constant 0 : index
    %0 = vector.load %arg1[%c0, %c0_0] : memref<32x256xf32, #tpu.memory_space<vmem>>, vector<32x256xf32>
    %c0_1 = arith.constant 0 : index
    %c0_2 = arith.constant 0 : index
    %1 = vector.load %arg2[%c0_1, %c0_2] : memref<256x256xf32, #tpu.memory_space<vmem>>, vector<256x256xf32>
    %cst = arith.constant dense<0.000000e+00> : vector<32x256xf32>
    %2 = tpu.matmul %0, %1, %cst {dimension_numbers = #tpu.dot_dimension_numbers<[1], [1], [0], [0], [0, 0, 1, 0], [], []>} : vector<32x256xf32>, vector<256x256xf32>, vector<32x256xf32> -> vector<32x256xf32>
    %c0_3 = arith.constant 0 : index
    %c0_4 = arith.constant 0 : index
    %3 = vector.load %arg3[%c0_3, %c0_4] : memref<1x256xf32, #tpu.memory_space<vmem>>, vector<1x256xf32>
    %4 = vector.broadcast %3 : vector<1x256xf32> to vector<32x256xf32>
    %5 = arith.addf %2, %4 : vector<32x256xf32>
    %cst_5 = arith.constant 0.000000e+00 : f32
    %6 = vector.broadcast %cst_5 : f32 to vector<32x256xf32>
    %7 = arith.maximumf %5, %6 : vector<32x256xf32>
    %c0_6 = arith.constant 0 : index
    %c0_7 = arith.constant 0 : index
    %8 = vector.load %arg4[%c0_6, %c0_7] : memref<256x256xf32, #tpu.memory_space<vmem>>, vector<256x256xf32>
    %cst_8 = arith.constant dense<0.000000e+00> : vector<32x256xf32>
    %9 = tpu.matmul %7, %8, %cst_8 {dimension_numbers = #tpu.dot_dimension_numbers<[1], [1], [0], [0], [0, 0, 1, 0], [], []>} : vector<32x256xf32>, vector<256x256xf32>, vector<32x256xf32> -> vector<32x256xf32>
    %c0_9 = arith.constant 0 : index
    %c0_10 = arith.constant 0 : index
    %10 = vector.load %arg5[%c0_9, %c0_10] : memref<1x256xf32, #tpu.memory_space<vmem>>, vector<1x256xf32>
    %11 = vector.broadcast %10 : vector<1x256xf32> to vector<32x256xf32>
    %12 = arith.addf %9, %11 : vector<32x256xf32>
    %c0_11 = arith.constant 0 : index
    %c0_12 = arith.constant 0 : index
    %13 = vector.load %arg6[%c0_11, %c0_12] : memref<32x256xf32, #tpu.memory_space<vmem>>, vector<32x256xf32>
    tpu.vector_store %arg6[%c0_11, %c0_12], %12 {strides = array<i32>} : memref<32x256xf32, #tpu.memory_space<vmem>>, vector<32x256xf32>,
    return
  }
  func.func @transform_0(%arg0: i32) -> (i32, i32) {
    %c0_i32 = arith.constant 0 : i32
    %c0_i32_0 = arith.constant 0 : i32
    return %arg0, %c0_i32 : i32, i32
  }
  func.func @transform_1(%arg0: i32) -> (i32, i32) {
    %c0_i32 = arith.constant 0 : i32
    %c0_i32_0 = arith.constant 0 : i32
    %c0_i32_1 = arith.constant 0 : i32
    return %c0_i32, %c0_i32_0 : i32, i32
  }
  func.func @transform_2(%arg0: i32) -> (i32, i32) {
    %c0_i32 = arith.constant 0 : i32
    %c0_i32_0 = arith.constant 0 : i32
    %c0_i32_1 = arith.constant 0 : i32
    return %c0_i32, %c0_i32_0 : i32, i32
  }
  func.func @transform_3(%arg0: i32) -> (i32, i32) {
    %c0_i32 = arith.constant 0 : i32
    %c0_i32_0 = arith.constant 0 : i32
    %c0_i32_1 = arith.constant 0 : i32
    return %c0_i32, %c0_i32_0 : i32, i32
  }
  func.func @transform_4(%arg0: i32) -> (i32, i32) {
    %c0_i32 = arith.constant 0 : i32
    %c0_i32_0 = arith.constant 0 : i32
    %c0_i32_1 = arith.constant 0 : i32
    return %c0_i32, %c0_i32_0 : i32, i32
  }
  func.func @transform_5(%arg0: i32) -> (i32, i32) {
    %c0_i32 = arith.constant 0 : i32
    %c0_i32_0 = arith.constant 0 : i32
    return %arg0, %c0_i32 : i32, i32
  }
}

</mosaic_0001>

<llo_original>
// kernel: tpu_custom_call.1
$region0: #{tpu_custom_call.1}
  #allocation0 [shape = 'u32[]', space=smem, size = 0x4, offset = 0x4, fixed_abs, tag = 'smem constant byte address 0x4 - core index']
  #allocation1 [shape = 'u32[144,128]{1,0:T(1,128)}', space=vmem, size = 0x12000, scoped, tag = 'internal scratch']
  %s0 = inlined_call_operand.hbm [shape: f32[64,256], index: 0, kind: input, shape index: {}]
  %s1 = inlined_call_operand.hbm [shape: f32[256,256], index: 1, kind: input, shape index: {}]
  %s2 = inlined_call_operand.vmem [shape: f32[1,256], index: 2, kind: input, shape index: {}]
  %s3 = inlined_call_operand.hbm [shape: f32[256,256], index: 3, kind: input, shape index: {}]
  %s4 = inlined_call_operand.vmem [shape: f32[1,256], index: 4, kind: input, shape index: {}]
  %s5 = inlined_call_operand.hbm [shape: f32[64,256], index: 5, kind: output, shape index: {}]
  %s6 = sld [smem:[#allocation0]]
  $region65: #{tpu_custom_call.1} parent=0
    _
  %s8 = ssub.s32 1, %s6
  %s9 = scalar_select 0, %s8, %s6
  $region1: #{tpu_custom_call.1} parent=0
    #allocation2 [shape = 'u8[65536]{0}', space=vmem, size = 0x10000, scoped, tag = 'input window, operand 0']
    #allocation3 [shape = 's32[2]{0}', space=sflag, size = 0x8, scoped, tag = 'scoped memory for tpu_custom_call.1']
    #allocation4 [shape = 's32[2]{0}', space=sflag, size = 0x8, scoped, tag = 'scoped memory for tpu_custom_call.1']
    #allocation5 [shape = 'u8[262144]{0}', space=vmem, size = 0x40000, scoped, tag = 'input window, operand 1, single buffered']
    #allocation6 [shape = 's32[1]{0}', space=sflag, size = 0x4, scoped, tag = 'scoped memory for tpu_custom_call.1']
    #allocation7 [shape = 'u8[262144]{0}', space=vmem, size = 0x40000, scoped, tag = 'input window, operand 3, single buffered']
    #allocation8 [shape = 'u8[65536]{0}', space=vmem, size = 0x10000, scoped, tag = 'output window, operand 0']
    %10 = vsyncpa [#allocation3], 0
    %s11 = scalar_lea.sflag [#allocation3], 1
    %12 = vsyncpa %s11, 0
    %13 = vsyncpa [#allocation6], 0
    %14 = vsyncpa [#allocation4], 0
    %s15 = scalar_lea.sflag [#allocation4], 1
    %16 = vsyncpa %s15, 0
    loop: start=0, step=1, limit=4
    $region2: #{tpu_custom_call.1} parent=1 // loop_pre_header
      _
    $region3: #{tpu_custom_call.1} parent=1 // loop_header
      %s18 = sphi 0, %s22
      %p19 = scmp.ge.s32.totalorder %s18, 4
      %s28 = sphi 0, %s30
      %s31 = sphi 0, %s28
      %s32 = sphi 0, %s31
      %s48 = sphi 0, %s32
      %s52 = sphi 0, %s52
      %s54 = sphi 0, %s52
      %s55 = sphi 0, %s54
      %s69 = sphi 0, %s55
      %s73 = sphi 0, %s73
      %s75 = sphi 0, %s73
      %s76 = sphi 0, %s75
      %s90 = sphi 0, %s76
      %s94 = sphi 0, %s94
      %s96 = sphi 0, %s94
      %s97 = sphi 0, %s96
      %s111 = sphi 0, %s97
      %s115 = sphi 0, %s115
      %s117 = sphi 0, %s115
      %s118 = sphi 0, %s117
      %s132 = sphi 0, %s118
      %s138 = sphi 0, %s140
      %s141 = sphi 0, %s138
      %s142 = sphi 0, %s141
      %s158 = sphi 0, %s142
    $region4: #{tpu_custom_call.1} parent=1 // loop_header_branch
      %21 = sbr.rel (%p19) target = $region8
    $region5: #{tpu_custom_call.1} parent=1 // loop_body
      %s23 = ssub.s32 %s18, 1
      %s24 = ssub.s32 %s18, 2
      %s25 = sadd.s32 %s18, 1
      %s26 = ssub.s32 %s18, %s25
      %p27 = scmp.eq.s32.totalorder %s26, 0
      %s29 = sadd.s32 %s28, 1
      %s30 = scalar_select %p27, %s28, %s29
      %p33 = pneg %p27
      %p34 = scmp.eq.s32.totalorder %s18, 1
      %p35 = por %p33, %p34
      %p36 = scmp.ne.s32.totalorder %s28, %s31
      %p37 = scmp.eq.s32.totalorder %s18, 0
      %p38 = por %p36, %p37
      %p39 = scmp.ne.s32.totalorder %s28, %s31
      %p40 = scmp.eq.s32.totalorder %s23, 1
      %p41 = por %p39, %p40
      %p42 = scmp.ne.s32.totalorder %s31, %s32
      %p43 = scmp.eq.s32.totalorder %s23, 0
      %p44 = por %p42, %p43
      %p45 = scmp.ne.s32.totalorder %s31, %s32
      %p46 = scmp.eq.s32.totalorder %s24, 1
      %p47 = por %p45, %p46
      %p49 = scmp.ne.s32.totalorder %s32, %s48
      %p50 = scmp.eq.s32.totalorder %s24, 0
      %p51 = por %p49, %p50
      %s53 = sadd.s32 %s52, 1
      %p56 = scmp.eq.s32.totalorder %s18, 1
      %p57 = scmp.ne.s32.totalorder %s52, %s54
      %p58 = scmp.eq.s32.totalorder %s18, 0
      %p59 = por %p57, %p58
      %p60 = scmp.ne.s32.totalorder %s52, %s54
      %p61 = scmp.eq.s32.totalorder %s23, 1
      %p62 = por %p60, %p61
      %p63 = scmp.ne.s32.totalorder %s54, %s55
      %p64 = scmp.eq.s32.totalorder %s23, 0
      %p65 = por %p63, %p64
      %p66 = scmp.ne.s32.totalorder %s54, %s55
      %p67 = scmp.eq.s32.totalorder %s24, 1
      %p68 = por %p66, %p67
      %p70 = scmp.ne.s32.totalorder %s55, %s69
      %p71 = scmp.eq.s32.totalorder %s24, 0
      %p72 = por %p70, %p71
      %s74 = sadd.s32 %s73, 1
      %p77 = scmp.eq.s32.totalorder %s18, 1
      %p78 = scmp.ne.s32.totalorder %s73, %s75
      %p79 = scmp.eq.s32.totalorder %s18, 0
      %p80 = por %p78, %p79
      %p81 = scmp.ne.s32.totalorder %s73, %s75
      %p82 = scmp.eq.s32.totalorder %s23, 1
      %p83 = por %p81, %p82
      %p84 = scmp.ne.s32.totalorder %s75, %s76
      %p85 = scmp.eq.s32.totalorder %s23, 0
      %p86 = por %p84, %p85
      %p87 = scmp.ne.s32.totalorder %s75, %s76
      %p88 = scmp.eq.s32.totalorder %s24, 1
      %p89 = por %p87, %p88
      %p91 = scmp.ne.s32.totalorder %s76, %s90
      %p92 = scmp.eq.s32.totalorder %s24, 0
      %p93 = por %p91, %p92
      %s95 = sadd.s32 %s94, 1
      %p98 = scmp.eq.s32.totalorder %s18, 1
      %p99 = scmp.ne.s32.totalorder %s94, %s96
      %p100 = scmp.eq.s32.totalorder %s18, 0
      %p101 = por %p99, %p100
      %p102 = scmp.ne.s32.totalorder %s94, %s96
      %p103 = scmp.eq.s32.totalorder %s23, 1
      %p104 = por %p102, %p103
      %p105 = scmp.ne.s32.totalorder %s96, %s97
      %p106 = scmp.eq.s32.totalorder %s23, 0
      %p107 = por %p105, %p106
      %p108 = scmp.ne.s32.totalorder %s96, %s97
      %p109 = scmp.eq.s32.totalorder %s24, 1
      %p110 = por %p108, %p109
      %p112 = scmp.ne.s32.totalorder %s97, %s111
      %p113 = scmp.eq.s32.totalorder %s24, 0
      %p114 = por %p112, %p113
      %s116 = sadd.s32 %s115, 1
      %p119 = scmp.eq.s32.totalorder %s18, 1
      %p120 = scmp.ne.s32.totalorder %s115, %s117
      %p121 = scmp.eq.s32.totalorder %s18, 0
      %p122 = por %p120, %p121
      %p123 = scmp.ne.s32.totalorder %s115, %s117
      %p124 = scmp.eq.s32.totalorder %s23, 1
      %p125 = por %p123, %p124
      %p126 = scmp.ne.s32.totalorder %s117, %s118
      %p127 = scmp.eq.s32.totalorder %s23, 0
      %p128 = por %p126, %p127
      %p129 = scmp.ne.s32.totalorder %s117, %s118
      %p130 = scmp.eq.s32.totalorder %s24, 1
      %p131 = por %p129, %p130
      %p133 = scmp.ne.s32.totalorder %s118, %s132
      %p134 = scmp.eq.s32.totalorder %s24, 0
      %p135 = por %p133, %p134
      %s136 = ssub.s32 %s18, %s25
      %p137 = scmp.eq.s32.totalorder %s136, 0
      %s139 = sadd.s32 %s138, 1
      %s140 = scalar_select %p137, %s138, %s139
      %p143 = pneg %p137
      %p144 = scmp.eq.s32.totalorder %s18, 1
      %p145 = por %p143, %p144
      %p146 = scmp.ne.s32.totalorder %s138, %s141
      %p147 = scmp.eq.s32.totalorder %s18, 0
      %p148 = por %p146, %p147
      %p149 = scmp.ne.s32.totalorder %s138, %s141
      %p150 = scmp.eq.s32.totalorder %s23, 1
      %p151 = por %p149, %p150
      %p152 = scmp.ne.s32.totalorder %s141, %s142
      %p153 = scmp.eq.s32.totalorder %s23, 0
      %p154 = por %p152, %p153
      %p155 = scmp.ne.s32.totalorder %s141, %s142
      %p156 = scmp.eq.s32.totalorder %s24, 1
      %p157 = por %p155, %p156
      %p159 = scmp.ne.s32.totalorder %s142, %s158
      %p160 = scmp.eq.s32.totalorder %s24, 0
      %p161 = por %p159, %p160
      %p162 = scmp.le.s32.totalorder 1, %s18
      %p163 = scmp.lt.s32.totalorder %s18, 3
      %p164 = pnand %p162, %p163
      %p165 = pneg %p164
      // Predicated region
      $region9: #{tpu_custom_call.1} parent=5 // pred_check
        _
      $region10: #{tpu_custom_call.1} parent=5 // pred_check_branch
        %167 = sbr.rel (%p164) target = $region12
      $region11: #{tpu_custom_call.1} parent=5 // pred_region
        %s168 = ssub.s32 %s18, 1
        // Predicated region
        $region13: #{tpu_custom_call.1} parent=11 // pred_check
          %p169 = pneg %p65
        $region14: #{tpu_custom_call.1} parent=11 // pred_check_branch
          %171 = sbr.rel (%p169) target = $region16
        $region15: #{tpu_custom_call.1} parent=11 // pred_region
          %s173 = ssub.s32 8192, 8192
          %174 = vsyncadd [#allocation6], %s173
          %s175 = sshll.u32 [#allocation5], 4
          %s176 = int_to_ptr.vmem [resolvable:$true] %s175
          %181 = dma.hbm_to_vmem [thread:$0]  %s1, 8192, %s176, [#allocation6], 256, 256, 16
        $region16: #{tpu_custom_call.1} parent=11 // pred_fallthru
          _
        // Predicated region
        $region17: #{tpu_custom_call.1} parent=11 // pred_check
          %p182 = pneg %p86
        $region18: #{tpu_custom_call.1} parent=11 // pred_check_branch
          %184 = sbr.rel (%p182) target = $region20
        $region19: #{tpu_custom_call.1} parent=11 // pred_region
          _
        $region20: #{tpu_custom_call.1} parent=11 // pred_fallthru
          _
        // Predicated region
        $region21: #{tpu_custom_call.1} parent=11 // pred_check
          %p185 = pneg %p107
        $region22: #{tpu_custom_call.1} parent=11 // pred_check_branch
          %187 = sbr.rel (%p185) target = $region24
        $region23: #{tpu_custom_call.1} parent=11 // pred_region
          %s189 = ssub.s32 8192, 8192
          %190 = vsyncadd [#allocation6], %s189
          %s191 = sshll.u32 [#allocation7], 4
          %s192 = int_to_ptr.vmem [resolvable:$true] %s191
          %197 = dma.hbm_to_vmem [thread:$0]  %s3, 8192, %s192, [#allocation6], 256, 256, 16
        $region24: #{tpu_custom_call.1} parent=11 // pred_fallthru
          _
        // Predicated region
        $region25: #{tpu_custom_call.1} parent=11 // pred_check
          %p198 = pneg %p128
        $region26: #{tpu_custom_call.1} parent=11 // pred_check_branch
          %200 = sbr.rel (%p198) target = $region28
        $region27: #{tpu_custom_call.1} parent=11 // pred_region
          _
        $region28: #{tpu_custom_call.1} parent=11 // pred_fallthru
          _
      $region12: #{tpu_custom_call.1} parent=5 // pred_fallthru
        _
      %p201 = scmp.lt.s32.totalorder %s18, 2
      // Predicated region
      $region29: #{tpu_custom_call.1} parent=5 // pred_check
        %p202 = pneg %p201
      $region30: #{tpu_custom_call.1} parent=5 // pred_check_branch
        %204 = sbr.rel (%p202) target = $region32
      $region31: #{tpu_custom_call.1} parent=5 // pred_region
        // Predicated region
        $region33: #{tpu_custom_call.1} parent=31 // pred_check
          %p205 = pneg %p38
        $region34: #{tpu_custom_call.1} parent=31 // pred_check_branch
          %207 = sbr.rel (%p205) target = $region36
        $region35: #{tpu_custom_call.1} parent=31 // pred_region
          %s208 = sand.u32 %s28, 1
          %s209 = scalar_lea.sflag [#allocation3], %s208
          %s210 = sand.u32 %s28, 1
          %s211 = smul.addr %s210, 64
          %s212 = scalar_lea.vmem [#allocation2], %s211
          %s213 = smul.u32 4, %s18
          %s215 = ssub.s32 1024, 1024
          %216 = vsyncadd %s209, %s215
          %s217 = smul.addr %s213, 2
          %s218 = smul.addr %s217, 128
          %s219 = scalar_lea.hbm %s0, %s218
          %s220 = sshll.u32 %s212, 4
          %s221 = int_to_ptr.vmem [resolvable:$true] %s220
          %226 = dma.hbm_to_vmem [thread:$0]  %s219, 1024, %s221, %s209, 256, 256, 16
        $region36: #{tpu_custom_call.1} parent=31 // pred_fallthru
          _
      $region32: #{tpu_custom_call.1} parent=5 // pred_fallthru
        _
      %p227 = scmp.le.s32.totalorder 1, %s18
      %p228 = scmp.lt.s32.totalorder %s18, 3
      %p229 = pnand %p227, %p228
      %p230 = pneg %p229
      // Predicated region
      $region37: #{tpu_custom_call.1} parent=5 // pred_check
        _
      $region38: #{tpu_custom_call.1} parent=5 // pred_check_branch
        %232 = sbr.rel (%p229) target = $region40
      $region39: #{tpu_custom_call.1} parent=5 // pred_region
        %s233 = ssub.s32 %s18, 1
        %s234 = sand.u32 %s31, 1
        %s235 = scalar_lea.sflag [#allocation3], %s234
        %s236 = sand.u32 %s31, 1
        %s237 = smul.addr %s236, 64
        %s238 = scalar_lea.vmem [#allocation2], %s237
        // Predicated region
        $region41: #{tpu_custom_call.1} parent=39 // pred_check
          %p239 = pneg %p44
        $region42: #{tpu_custom_call.1} parent=39 // pred_check_branch
          %241 = sbr.rel (%p239) target = $region44
        $region43: #{tpu_custom_call.1} parent=39 // pred_region
          %242 = dma.done %s235, 1024
        $region44: #{tpu_custom_call.1} parent=39 // pred_fallthru
          _
        // Predicated region
        $region45: #{tpu_custom_call.1} parent=39 // pred_check
          %p243 = pneg %p65
        $region46: #{tpu_custom_call.1} parent=39 // pred_check_branch
          %245 = sbr.rel (%p243) target = $region48
        $region47: #{tpu_custom_call.1} parent=39 // pred_region
          %246 = dma.done [#allocation6], 8192
        $region48: #{tpu_custom_call.1} parent=39 // pred_fallthru
          _
        // Predicated region
        $region49: #{tpu_custom_call.1} parent=39 // pred_check
          %p247 = pneg %p107
        $region50: #{tpu_custom_call.1} parent=39 // pred_check_branch
          %249 = sbr.rel (%p247) target = $region52
        $region51: #{tpu_custom_call.1} parent=39 // pred_region
          %250 = dma.done [#allocation6], 8192
        $region52: #{tpu_custom_call.1} parent=39 // pred_fallthru
          _
        %s251 = sand.u32 %s31, 1
        %s252 = scalar_lea.sflag [#allocation3], %s251
        %s253 = sand.u32 %s31, 1
        %s254 = smul.addr %s253, 64
        %s255 = scalar_lea.vmem [#allocation2], %s254
        %p256 = pneg %p44
        %p257 = pneg %p41
        %p258 = pneg %p65
        %p259 = pneg %p62
        %p260 = pneg %p86
        %p261 = pneg %p83
        %p262 = pneg %p107
        %p263 = pneg %p104
        %p264 = pneg %p128
        %p265 = pneg %p125
        %p266 = pneg %p154
        %p267 = pneg %p151
        %s268 = sand.u32 %s141, 1
        %s269 = scalar_lea.sflag [#allocation4], %s268
        %s270 = sand.u32 %s141, 1
        %s271 = smul.addr %s270, 64
        %s272 = scalar_lea.vmem [#allocation8], %s271
        %s273 = smul.u32 4, %s23
        %s274 = smul.u32 4, %s23
        %v275 = vld [vmem:[%s238] sm:$0xff]
        %v276 = vld [vmem:[%s238 + $0x8] sm:$0xff]
        %v277 = vld [vmem:[%s238 + $0x10] sm:$0xff]
        %v278 = vld [vmem:[%s238 + $0x18] sm:$0xff]
        %v279 = vld [vmem:[%s238 + $0x20] sm:$0xff]
        %v280 = vld [vmem:[%s238 + $0x28] sm:$0xff]
        %v281 = vld [vmem:[%s238 + $0x30] sm:$0xff]
        %v282 = vld [vmem:[%s238 + $0x38] sm:$0xff]
        %v283 = vld [vmem:[#allocation5] sm:$0xff]
        %v284 = vld [vmem:[#allocation5 + $0x8] sm:$0xff]
        %v285 = vld [vmem:[#allocation5 + $0x10] sm:$0xff]
        %v286 = vld [vmem:[#allocation5 + $0x18] sm:$0xff]
        %v287 = vld [vmem:[#allocation5 + $0x20] sm:$0xff]
        %v288 = vld [vmem:[#allocation5 + $0x28] sm:$0xff]
        %v289 = vld [vmem:[#allocation5 + $0x30] sm:$0xff]
        %v290 = vld [vmem:[#allocation5 + $0x38] sm:$0xff]
        %v291 = vld [vmem:[#allocation5 + $0x40] sm:$0xff]
        %v292 = vld [vmem:[#allocation5 + $0x48] sm:$0xff]
        %v293 = vld [vmem:[#allocation5 + $0x50] sm:$0xff]
        %v294 = vld [vmem:[#allocation5 + $0x58] sm:$0xff]
        %v295 = vld [vmem:[#allocation5 + $0x60] sm:$0xff]
        %v296 = vld [vmem:[#allocation5 + $0x68] sm:$0xff]
        %v297 = vld [vmem:[#allocation5 + $0x70] sm:$0xff]
        %v298 = vld [vmem:[#allocation5 + $0x78] sm:$0xff]
        %v299 = vld [vmem:[#allocation5 + $0x80] sm:$0xff]
        %v300 = vld [vmem:[#allocation5 + $0x88] sm:$0xff]
        %v301 = vld [vmem:[#allocation5 + $0x90] sm:$0xff]
        %v302 = vld [vmem:[#allocation5 + $0x98] sm:$0xff]
        %v303 = vld [vmem:[#allocation5 + $0xa0] sm:$0xff]
        %v304 = vld [vmem:[#allocation5 + $0xa8] sm:$0xff]
        %v305 = vld [vmem:[#allocation5 + $0xb0] sm:$0xff]
        %v306 = vld [vmem:[#allocation5 + $0xb8] sm:$0xff]
        %v307 = vld [vmem:[#allocation5 + $0xc0] sm:$0xff]
        %v308 = vld [vmem:[#allocation5 + $0xc8] sm:$0xff]
        %v309 = vld [vmem:[#allocation5 + $0xd0] sm:$0xff]
        %v310 = vld [vmem:[#allocation5 + $0xd8] sm:$0xff]
        %v311 = vld [vmem:[#allocation5 + $0xe0] sm:$0xff]
        %v312 = vld [vmem:[#allocation5 + $0xe8] sm:$0xff]
        %v313 = vld [vmem:[#allocation5 + $0xf0] sm:$0xff]
        %v314 = vld [vmem:[#allocation5 + $0xf8] sm:$0xff]
        %v315 = vld [vmem:[#allocation5 + $0x100] sm:$0xff]
        %v316 = vld [vmem:[#allocation5 + $0x108] sm:$0xff]
        %v317 = vld [vmem:[#allocation5 + $0x110] sm:$0xff]
        %v318 = vld [vmem:[#allocation5 + $0x118] sm:$0xff]
        %v319 = vld [vmem:[#allocation5 + $0x120] sm:$0xff]
        %v320 = vld [vmem:[#allocation5 + $0x128] sm:$0xff]
        %v321 = vld [vmem:[#allocation5 + $0x130] sm:$0xff]
        %v322 = vld [vmem:[#allocation5 + $0x138] sm:$0xff]
        %v323 = vld [vmem:[#allocation5 + $0x140] sm:$0xff]
        %v324 = vld [vmem:[#allocation5 + $0x148] sm:$0xff]
        %v325 = vld [vmem:[#allocation5 + $0x150] sm:$0xff]
        %v326 = vld [vmem:[#allocation5 + $0x158] sm:$0xff]
        %v327 = vld [vmem:[#allocation5 + $0x160] sm:$0xff]
        %v328 = vld [vmem:[#allocation5 + $0x168] sm:$0xff]
        %v329 = vld [vmem:[#allocation5 + $0x170] sm:$0xff]
        %v330 = vld [vmem:[#allocation5 + $0x178] sm:$0xff]
        %v331 = vld [vmem:[#allocation5 + $0x180] sm:$0xff]
        %v332 = vld [vmem:[#allocation5 + $0x188] sm:$0xff]
        %v333 = vld [vmem:[#allocation5 + $0x190] sm:$0xff]
        %v334 = vld [vmem:[#allocation5 + $0x198] sm:$0xff]
        %v335 = vld [vmem:[#allocation5 + $0x1a0] sm:$0xff]
        %v336 = vld [vmem:[#allocation5 + $0x1a8] sm:$0xff]
        %v337 = vld [vmem:[#allocation5 + $0x1b0] sm:$0xff]
        %v338 = vld [vmem:[#allocation5 + $0x1b8] sm:$0xff]
        %v339 = vld [vmem:[#allocation5 + $0x1c0] sm:$0xff]
        %v340 = vld [vmem:[#allocation5 + $0x1c8] sm:$0xff]
        %v341 = vld [vmem:[#allocation5 + $0x1d0] sm:$0xff]
        %v342 = vld [vmem:[#allocation5 + $0x1d8] sm:$0xff]
        %v343 = vld [vmem:[#allocation5 + $0x1e0] sm:$0xff]
        %v344 = vld [vmem:[#allocation5 + $0x1e8] sm:$0xff]
        %v345 = vld [vmem:[#allocation5 + $0x1f0] sm:$0xff]
        %v346 = vld [vmem:[#allocation5 + $0x1f8] sm:$0xff]
        %v347 = vld [vmem:[%s2] sm:$0x3]
        %v349 = vlaneseq
        %v350 = vshrl.u32 %v349, 7
        %v351 = vsub.s32 0, %v350
        %v352 = vrot.slane %v347, %v351
        %v353 = vlaneseq
        %v354 = vshrl.u32 %v353, 7
        %v355 = vsub.s32 1, %v354
        %v356 = vrot.slane %v347, %v355
        %359 = vmatprep.subr.mxu0 %v284
        %360 = vmatpush1.xpose.msra.mxu0 %v283
        %361 = vmatprep.subr.mxu0 %v286
        %362 = vmatpush1.xpose.msra.mxu0 %v285
        %363 = vmatprep.subr.mxu0 %v288
        %364 = vmatpush1.xpose.msra.mxu0 %v287
        %365 = vmatprep.subr.mxu0 %v290
        %366 = vmatpush1.xpose.msra.mxu0 %v289
        %367 = vmatprep.subr.mxu0 %v292
        %368 = vmatpush1.xpose.msra.mxu0 %v291
        %369 = vmatprep.subr.mxu0 %v294
        %370 = vmatpush1.xpose.msra.mxu0 %v293
        %371 = vmatprep.subr.mxu0 %v296
        %372 = vmatpush1.xpose.msra.mxu0 %v295
        %373 = vmatprep.subr.mxu0 %v298
        %374 = vmatpush1.xpose.msra.mxu0 %v297
        %375 = vmatprep.subr.mxu0 %v300
        %376 = vmatpush1.xpose.msra.mxu0 %v299
        %377 = vmatprep.subr.mxu0 %v302
        %378 = vmatpush1.xpose.msra.mxu0 %v301
        %379 = vmatprep.subr.mxu0 %v304
        %380 = vmatpush1.xpose.msra.mxu0 %v303
        %381 = vmatprep.subr.mxu0 %v306
        %382 = vmatpush1.xpose.msra.mxu0 %v305
        %383 = vmatprep.subr.mxu0 %v308
        %384 = vmatpush1.xpose.msra.mxu0 %v307
        %385 = vmatprep.subr.mxu0 %v310
        %386 = vmatpush1.xpose.msra.mxu0 %v309
        %387 = vmatprep.subr.mxu0 %v312
        %388 = vmatpush1.xpose.msra.mxu0 %v311
        %389 = vmatprep.subr.mxu0 %v314
        %390 = vmatpush1.xpose.msra.mxu0 %v313
        %391 = vmatprep.subr.mxu0 %v316
        %392 = vmatpush1.xpose.msra.mxu0 %v315
        %393 = vmatprep.subr.mxu0 %v318
        %394 = vmatpush1.xpose.msra.mxu0 %v317
        %395 = vmatprep.subr.mxu0 %v320
        %396 = vmatpush1.xpose.msra.mxu0 %v319
        %397 = vmatprep.subr.mxu0 %v322
        %398 = vmatpush1.xpose.msra.mxu0 %v321
        %399 = vmatprep.subr.mxu0 %v324
        %400 = vmatpush1.xpose.msra.mxu0 %v323
        %401 = vmatprep.subr.mxu0 %v326
        %402 = vmatpush1.xpose.msra.mxu0 %v325
        %403 = vmatprep.subr.mxu0 %v328
        %404 = vmatpush1.xpose.msra.mxu0 %v327
        %405 = vmatprep.subr.mxu0 %v330
        %406 = vmatpush1.xpose.msra.mxu0 %v329
        %407 = vmatprep.subr.mxu0 %v332
        %408 = vmatpush1.xpose.msra.mxu0 %v331
        %409 = vmatprep.subr.mxu0 %v334
        %410 = vmatpush1.xpose.msra.mxu0 %v333
        %411 = vmatprep.subr.mxu0 %v336
        %412 = vmatpush1.xpose.msra.mxu0 %v335
        %413 = vmatprep.subr.mxu0 %v338
        %414 = vmatpush1.xpose.msra.mxu0 %v337
        %415 = vmatprep.subr.mxu0 %v340
        %416 = vmatpush1.xpose.msra.mxu0 %v339
        %417 = vmatprep.subr.mxu0 %v342
        %418 = vmatpush1.xpose.msra.mxu0 %v341
        %419 = vmatprep.subr.mxu0 %v344
        %420 = vmatpush1.xpose.msra.mxu0 %v343
        %421 = vmatprep.subr.mxu0 %v346
        %422 = vmatpush1.xpose.msra.mxu0 %v345
        %423 = vmatprep.mubr.f32.mxu0 %v276
        %424 = vmatmul.mubr.f32.gmra.mrb[0].mxu0 %v275
        %v425 = vpop.f32.mrb[0].mxu0
        %v426 = vadd.f32 %v352, %v425
        %v427 = vpop.f32.mrb[0].mxu0
        %v428 = vadd.f32 %v356, %v427
        %429 = vmatprep.mubr.f32.mxu0 %v278
        %430 = vmatmul.mubr.f32.gmra.mrb[0].mxu0 %v277
        %v431 = vpop.f32.mrb[0].mxu0
        %v432 = vadd.f32 %v352, %v431
        %v433 = vpop.f32.mrb[0].mxu0
        %v434 = vadd.f32 %v356, %v433
        %435 = vmatprep.mubr.f32.mxu0 %v280
        %436 = vmatmul.mubr.f32.gmra.mrb[0].mxu0 %v279
        %v437 = vpop.f32.mrb[0].mxu0
        %v438 = vadd.f32 %v352, %v437
        %v439 = vpop.f32.mrb[0].mxu0
        %v440 = vadd.f32 %v356, %v439
        %441 = vmatprep.mubr.f32.mxu0 %v282
        %442 = vmatmul.mubr.f32.gmra.mrb[0].mxu0 %v281
        %v443 = vpop.f32.mrb[0].mxu0
        %v444 = vadd.f32 %v352, %v443
        %v445 = vpop.f32.mrb[0].mxu0
        %v446 = vadd.f32 %v356, %v445
        %447 = vdwg.mxu0
        %v448 = vmax.f32 %v426, 0.0
        %v449 = vmax.f32 %v428, 0.0
        %v450 = vmax.f32 %v432, 0.0
        %v451 = vmax.f32 %v434, 0.0
        %v452 = vmax.f32 %v438, 0.0
        %v453 = vmax.f32 %v440, 0.0
        %v454 = vmax.f32 %v444, 0.0
        %v455 = vmax.f32 %v446, 0.0
        %v456 = vld [vmem:[#allocation7] sm:$0xff]
        %v457 = vld [vmem:[#allocation7 + $0x8] sm:$0xff]
        %v458 = vld [vmem:[#allocation7 + $0x10] sm:$0xff]
        %v459 = vld [vmem:[#allocation7 + $0x18] sm:$0xff]
        %v460 = vld [vmem:[#allocation7 + $0x20] sm:$0xff]
        %v461 = vld [vmem:[#allocation7 + $0x28] sm:$0xff]
        %v462 = vld [vmem:[#allocation7 + $0x30] sm:$0xff]
        %v463 = vld [vmem:[#allocation7 + $0x38] sm:$0xff]
        %v464 = vld [vmem:[#allocation7 + $0x40] sm:$0xff]
        %v465 = vld [vmem:[#allocation7 + $0x48] sm:$0xff]
        %v466 = vld [vmem:[#allocation7 + $0x50] sm:$0xff]
        %v467 = vld [vmem:[#allocation7 + $0x58] sm:$0xff]
        %v468 = vld [vmem:[#allocation7 + $0x60] sm:$0xff]
        %v469 = vld [vmem:[#allocation7 + $0x68] sm:$0xff]
        %v470 = vld [vmem:[#allocation7 + $0x70] sm:$0xff]
        %v471 = vld [vmem:[#allocation7 + $0x78] sm:$0xff]
        %v472 = vld [vmem:[#allocation7 + $0x80] sm:$0xff]
        %v473 = vld [vmem:[#allocation7 + $0x88] sm:$0xff]
        %v474 = vld [vmem:[#allocation7 + $0x90] sm:$0xff]
        %v475 = vld [vmem:[#allocation7 + $0x98] sm:$0xff]
        %v476 = vld [vmem:[#allocation7 + $0xa0] sm:$0xff]
        %v477 = vld [vmem:[#allocation7 + $0xa8] sm:$0xff]
        %v478 = vld [vmem:[#allocation7 + $0xb0] sm:$0xff]
        %v479 = vld [vmem:[#allocation7 + $0xb8] sm:$0xff]
        %v480 = vld [vmem:[#allocation7 + $0xc0] sm:$0xff]
        %v481 = vld [vmem:[#allocation7 + $0xc8] sm:$0xff]
        %v482 = vld [vmem:[#allocation7 + $0xd0] sm:$0xff]
        %v483 = vld [vmem:[#allocation7 + $0xd8] sm:$0xff]
        %v484 = vld [vmem:[#allocation7 + $0xe0] sm:$0xff]
        %v485 = vld [vmem:[#allocation7 + $0xe8] sm:$0xff]
        %v486 = vld [vmem:[#allocation7 + $0xf0] sm:$0xff]
        %v487 = vld [vmem:[#allocation7 + $0xf8] sm:$0xff]
        %v488 = vld [vmem:[#allocation7 + $0x100] sm:$0xff]
        %v489 = vld [vmem:[#allocation7 + $0x108] sm:$0xff]
        %v490 = vld [vmem:[#allocation7 + $0x110] sm:$0xff]
        %v491 = vld [vmem:[#allocation7 + $0x118] sm:$0xff]
        %v492 = vld [vmem:[#allocation7 + $0x120] sm:$0xff]
        %v493 = vld [vmem:[#allocation7 + $0x128] sm:$0xff]
        %v494 = vld [vmem:[#allocation7 + $0x130] sm:$0xff]
        %v495 = vld [vmem:[#allocation7 + $0x138] sm:$0xff]
        %v496 = vld [vmem:[#allocation7 + $0x140] sm:$0xff]
        %v497 = vld [vmem:[#allocation7 + $0x148] sm:$0xff]
        %v498 = vld [vmem:[#allocation7 + $0x150] sm:$0xff]
        %v499 = vld [vmem:[#allocation7 + $0x158] sm:$0xff]
        %v500 = vld [vmem:[#allocation7 + $0x160] sm:$0xff]
        %v501 = vld [vmem:[#allocation7 + $0x168] sm:$0xff]
        %v502 = vld [vmem:[#allocation7 + $0x170] sm:$0xff]
        %v503 = vld [vmem:[#allocation7 + $0x178] sm:$0xff]
        %v504 = vld [vmem:[#allocation7 + $0x180] sm:$0xff]
        %v505 = vld [vmem:[#allocation7 + $0x188] sm:$0xff]
        %v506 = vld [vmem:[#allocation7 + $0x190] sm:$0xff]
        %v507 = vld [vmem:[#allocation7 + $0x198] sm:$0xff]
        %v508 = vld [vmem:[#allocation7 + $0x1a0] sm:$0xff]
        %v509 = vld [vmem:[#allocation7 + $0x1a8] sm:$0xff]
        %v510 = vld [vmem:[#allocation7 + $0x1b0] sm:$0xff]
        %v511 = vld [vmem:[#allocation7 + $0x1b8] sm:$0xff]
        %v512 = vld [vmem:[#allocation7 + $0x1c0] sm:$0xff]
        %v513 = vld [vmem:[#allocation7 + $0x1c8] sm:$0xff]
        %v514 = vld [vmem:[#allocation7 + $0x1d0] sm:$0xff]
        %v515 = vld [vmem:[#allocation7 + $0x1d8] sm:$0xff]
        %v516 = vld [vmem:[#allocation7 + $0x1e0] sm:$0xff]
        %v517 = vld [vmem:[#allocation7 + $0x1e8] sm:$0xff]
        %v518 = vld [vmem:[#allocation7 + $0x1f0] sm:$0xff]
        %v519 = vld [vmem:[#allocation7 + $0x1f8] sm:$0xff]
        %v520 = vld [vmem:[%s4] sm:$0x3]
        %v522 = vlaneseq
        %v523 = vshrl.u32 %v522, 7
        %v524 = vsub.s32 0, %v523
        %v525 = vrot.slane %v520, %v524
        %v526 = vlaneseq
        %v527 = vshrl.u32 %v526, 7
        %v528 = vsub.s32 1, %v527
        %v529 = vrot.slane %v520, %v528
        %532 = vmatprep.subr.mxu0 %v457
        %533 = vmatpush1.xpose.msra.mxu0 %v456
        %534 = vmatprep.subr.mxu0 %v459
        %535 = vmatpush1.xpose.msra.mxu0 %v458
        %536 = vmatprep.subr.mxu0 %v461
        %537 = vmatpush1.xpose.msra.mxu0 %v460
        %538 = vmatprep.subr.mxu0 %v463
        %539 = vmatpush1.xpose.msra.mxu0 %v462
        %540 = vmatprep.subr.mxu0 %v465
        %541 = vmatpush1.xpose.msra.mxu0 %v464
        %542 = vmatprep.subr.mxu0 %v467
        %543 = vmatpush1.xpose.msra.mxu0 %v466
        %544 = vmatprep.subr.mxu0 %v469
        %545 = vmatpush1.xpose.msra.mxu0 %v468
        %546 = vmatprep.subr.mxu0 %v471
        %547 = vmatpush1.xpose.msra.mxu0 %v470
        %548 = vmatprep.subr.mxu0 %v473
        %549 = vmatpush1.xpose.msra.mxu0 %v472
        %550 = vmatprep.subr.mxu0 %v475
        %551 = vmatpush1.xpose.msra.mxu0 %v474
        %552 = vmatprep.subr.mxu0 %v477
        %553 = vmatpush1.xpose.msra.mxu0 %v476
        %554 = vmatprep.subr.mxu0 %v479
        %555 = vmatpush1.xpose.msra.mxu0 %v478
        %556 = vmatprep.subr.mxu0 %v481
        %557 = vmatpush1.xpose.msra.mxu0 %v480
        %558 = vmatprep.subr.mxu0 %v483
        %559 = vmatpush1.xpose.msra.mxu0 %v482
        %560 = vmatprep.subr.mxu0 %v485
        %561 = vmatpush1.xpose.msra.mxu0 %v484
        %562 = vmatprep.subr.mxu0 %v487
        %563 = vmatpush1.xpose.msra.mxu0 %v486
        %564 = vmatprep.subr.mxu0 %v489
        %565 = vmatpush1.xpose.msra.mxu0 %v488
        %566 = vmatprep.subr.mxu0 %v491
        %567 = vmatpush1.xpose.msra.mxu0 %v490
        %568 = vmatprep.subr.mxu0 %v493
        %569 = vmatpush1.xpose.msra.mxu0 %v492
        %570 = vmatprep.subr.mxu0 %v495
        %571 = vmatpush1.xpose.msra.mxu0 %v494
        %572 = vmatprep.subr.mxu0 %v497
        %573 = vmatpush1.xpose.msra.mxu0 %v496
        %574 = vmatprep.subr.mxu0 %v499
        %575 = vmatpush1.xpose.msra.mxu0 %v498
        %576 = vmatprep.subr.mxu0 %v501
        %577 = vmatpush1.xpose.msra.mxu0 %v500
        %578 = vmatprep.subr.mxu0 %v503
        %579 = vmatpush1.xpose.msra.mxu0 %v502
        %580 = vmatprep.subr.mxu0 %v505
        %581 = vmatpush1.xpose.msra.mxu0 %v504
        %582 = vmatprep.subr.mxu0 %v507
        %583 = vmatpush1.xpose.msra.mxu0 %v506
        %584 = vmatprep.subr.mxu0 %v509
        %585 = vmatpush1.xpose.msra.mxu0 %v508
        %586 = vmatprep.subr.mxu0 %v511
        %587 = vmatpush1.xpose.msra.mxu0 %v510
        %588 = vmatprep.subr.mxu0 %v513
        %589 = vmatpush1.xpose.msra.mxu0 %v512
        %590 = vmatprep.subr.mxu0 %v515
        %591 = vmatpush1.xpose.msra.mxu0 %v514
        %592 = vmatprep.subr.mxu0 %v517
        %593 = vmatpush1.xpose.msra.mxu0 %v516
        %594 = vmatprep.subr.mxu0 %v519
        %595 = vmatpush1.xpose.msra.mxu0 %v518
        %596 = vmatprep.mubr.f32.mxu0 %v449
        %597 = vmatmul.mubr.f32.gmra.mrb[0].mxu0 %v448
        %v598 = vpop.f32.mrb[0].mxu0
        %v599 = vadd.f32 %v525, %v598
        %v600 = vpop.f32.mrb[0].mxu0
        %v601 = vadd.f32 %v529, %v600
        %602 = vmatprep.mubr.f32.mxu0 %v451
        %603 = vmatmul.mubr.f32.gmra.mrb[0].mxu0 %v450
        %v604 = vpop.f32.mrb[0].mxu0
        %v605 = vadd.f32 %v525, %v604
        %v606 = vpop.f32.mrb[0].mxu0
        %v607 = vadd.f32 %v529, %v606
        %608 = vmatprep.mubr.f32.mxu0 %v453
        %609 = vmatmul.mubr.f32.gmra.mrb[0].mxu0 %v452
        %v610 = vpop.f32.mrb[0].mxu0
        %v611 = vadd.f32 %v525, %v610
        %v612 = vpop.f32.mrb[0].mxu0
        %v613 = vadd.f32 %v529, %v612
        %614 = vmatprep.mubr.f32.mxu0 %v455
        %615 = vmatmul.mubr.f32.gmra.mrb[0].mxu0 %v454
        %v616 = vpop.f32.mrb[0].mxu0
        %v617 = vadd.f32 %v525, %v616
        %v618 = vpop.f32.mrb[0].mxu0
        %v619 = vadd.f32 %v529, %v618
        %620 = vdwg.mxu0
        %621 = vst [vmem:[%s272] sm:$0xff] %v599
        %622 = vst [vmem:[%s272 + $0x8] sm:$0xff] %v601
        %623 = vst [vmem:[%s272 + $0x10] sm:$0xff] %v605
        %624 = vst [vmem:[%s272 + $0x18] sm:$0xff] %v607
        %625 = vst [vmem:[%s272 + $0x20] sm:$0xff] %v611
        %626 = vst [vmem:[%s272 + $0x28] sm:$0xff] %v613
        %627 = vst [vmem:[%s272 + $0x30] sm:$0xff] %v617
        %628 = vst [vmem:[%s272 + $0x38] sm:$0xff] %v619
        %s629 = sand.u32 %s141, 1
        %s630 = scalar_lea.sflag [#allocation4], %s629
        %s631 = sand.u32 %s141, 1
        %s632 = smul.addr %s631, 64
        %s633 = scalar_lea.vmem [#allocation8], %s632
        // Predicated region
        $region53: #{tpu_custom_call.1} parent=39 // pred_check
          %p634 = pneg %p151
        $region54: #{tpu_custom_call.1} parent=39 // pred_check_branch
          %636 = sbr.rel (%p634) target = $region56
        $region55: #{tpu_custom_call.1} parent=39 // pred_region
          %s637 = smul.u32 4, %s23
          %s639 = ssub.s32 1024, 1024
          %640 = vsyncadd %s630, %s639
          %s641 = smul.addr %s637, 2
          %s642 = smul.addr %s641, 128
          %s643 = scalar_lea.hbm %s5, %s642
          %s644 = sshll.u32 %s633, 4
          %s645 = int_to_ptr.vmem [resolvable:$true] %s644
          %650 = dma.vmem_to_hbm [thread:$0]  %s645, 1024, %s643, %s630, 256, 256, 16
        $region56: #{tpu_custom_call.1} parent=39 // pred_fallthru
          _
      $region40: #{tpu_custom_call.1} parent=5 // pred_fallthru
        _
      %p651 = scmp.le.s32.totalorder 2, %s18
      // Predicated region
      $region57: #{tpu_custom_call.1} parent=5 // pred_check
        %p652 = pneg %p651
      $region58: #{tpu_custom_call.1} parent=5 // pred_check_branch
        %654 = sbr.rel (%p652) target = $region60
      $region59: #{tpu_custom_call.1} parent=5 // pred_region
        %s655 = ssub.s32 %s18, 2
        // Predicated region
        $region61: #{tpu_custom_call.1} parent=59 // pred_check
          %p656 = pneg %p157
        $region62: #{tpu_custom_call.1} parent=59 // pred_check_branch
          %658 = sbr.rel (%p656) target = $region64
        $region63: #{tpu_custom_call.1} parent=59 // pred_region
          %s659 = sand.u32 %s142, 1
          %s660 = scalar_lea.sflag [#allocation4], %s659
          %s661 = sand.u32 %s142, 1
          %s662 = smul.addr %s661, 64
          %s663 = scalar_lea.vmem [#allocation8], %s662
          %664 = dma.done %s660, 1024
        $region64: #{tpu_custom_call.1} parent=59 // pred_fallthru
          _
      $region60: #{tpu_custom_call.1} parent=5 // pred_fallthru
        _
    $region6: #{tpu_custom_call.1} parent=1 // loop_footer
      %s22 = sadd.s32 1, %s18
    $region7: #{tpu_custom_call.1} parent=1 // loop_footer_branch
      %17 = sbr.rel target = $region3
    $region8: #{tpu_custom_call.1} parent=1 // loop_exit
      _
    %665 = vsyncpa [#allocation3], 1
    %s666 = scalar_lea.sflag [#allocation3], 1
    %667 = vsyncpa %s666, 1
    %668 = vsyncpa [#allocation6], 1
    %669 = vsyncpa [#allocation4], 1
    %s670 = scalar_lea.sflag [#allocation4], 1
    %671 = vsyncpa %s670, 1

</llo_original>
